<compile_context>
chip_gen: v7x
topology: tpu7x:2x2x1
jax: 0.10.0
libtpu: 0.0.40
codegen_flags: <defaults>
</compile_context>

<pallas_src>
from functools import partial

import numpy as np
import jax
import jax.numpy as jnp
from jax.experimental import pallas as pl
from jax.experimental.pallas import tpu as pltpu

B = 2
SEQ = 32                                             # CLS + 31 tokens
HIDDEN = 768
FILTER_SIZES = (2, 3, 4)
NUM_FILTERS = 3
NUM_FILTER_TOTAL = NUM_FILTERS * len(FILTER_SIZES)   # 9
MAX_SIZE = max(FILTER_SIZES)                         # 4
N_CLASS = 2
TOK = SEQ - 1                                        # 31 tokens after dropping CLS
CLS_COL = NUM_FILTER_TOTAL * MAX_SIZE                # 36: first classifier column
NCOL = CLS_COL + N_CLASS                             # 38 packed weight columns

# Packed params layout (single small f32 operand):
PW = NUM_FILTER_TOTAL + 1                            # 9 mask/weight cols + 1 CLS-selector col
CB_ROW = SEQ                                         # row 32: conv bias
WLP_ROW = SEQ + 1                                    # rows 33..34: classifier weights (pooled)
LB_ROW = SEQ + 3                                     # row 35: classifier bias
PARAM_ROWS = SEQ + 4                                 # 36

# --- static geometry guards (review correctness concern) -------------------------
# The roll-based tap alignment, the validity mask and the "wrapped rows are harmless"
# argument are derived for exactly this geometry; fail loudly if it changes.
assert TOK == 31, "MaxPool2d((31 - size + 1, 1)) in the module implies seq_len == 32"
assert FILTER_SIZES == (2, 3, 4) and NUM_FILTERS == 3
# contributing taps (j < size) of valid positions (q <= SEQ - size) never cross a
# sample's 32-row block, so a global sublane roll of the flat tile is safe:
assert all((SEQ - size) + (size - 1) <= SEQ - 1 for size in FILTER_SIZES)

HIGH = jax.lax.Precision.HIGHEST


def textcnn_kernel(x_ref, w_ref, p_ref, out_ref):
    """Fused TextCNN forward for one batch tile.

    x_ref  : [BT*32, 768] f32  embeddings, row b*32 + t = x[b, t, :]
    w_ref  : [768, 38]    f32  packed weights: 4 tap blocks of 9 conv columns
                               (zeros where tap >= filter size) + 2 classifier
                               columns for the CLS embedding
    p_ref  : [36, 10]     f32  packed static params:
                               rows 0..31 : cols 0..8 pool validity mask,
                                            col 9 CLS row selector (1.0 at row 0)
                               row  32    : cols 0..8 conv bias
                               rows 33..34: cols 0..8 classifier weights (pooled)
                               row  35    : cols 0..1 classifier bias
    out_ref: [BT, 2]      f32  logits
    """
    rows = x_ref.shape[0]
    nb = rows // SEQ

    # --- single f32 MXU matmul for every conv tap + the CLS classifier columns ---
    s = jnp.dot(x_ref[...], w_ref[...], preferred_element_type=jnp.float32)  # [rows, 38]

    # --- conv tap-sum via XLU sublane rotations -----------------------------------
    # Row b*32 + q of `conv` is the conv output at position q-1 of sample b:
    #   conv[q] = sum_j s_j[q + j]   (tap 0 unshifted, taps 1..3 rolled up by j).
    # pltpu.roll follows jnp.roll semantics, so "pull row r+j into row r" uses
    # shift = rows - j.  Wrapped rows only reach zero weight columns (tap >= size)
    # or positions removed by the static mask below.
    conv = s[:, 0:NUM_FILTER_TOTAL]
    for j in range(1, MAX_SIZE):
        blk = s[:, NUM_FILTER_TOTAL * j:NUM_FILTER_TOTAL * (j + 1)]
        conv = conv + pltpu.roll(blk, shift=rows - j, axis=0)

    cb = p_ref[CB_ROW:CB_ROW + 1, 0:NUM_FILTER_TOTAL]                # [1, 9]
    h = jnp.maximum(conv + cb, 0.0)                                  # [rows, 9] ReLU

    # --- batched masked max-pool (no per-sample Python loop) ----------------------
    # [rows, 9] -> [nb, 32, 9] is a sublane-group split (32 % 8 == 0): no movement.
    # ReLU output >= 0, so multiplying invalid positions by 0 cannot win the max.
    mask = p_ref[0:SEQ, 0:NUM_FILTER_TOTAL]                          # static [32, 9]
    h3 = h.reshape(nb, SEQ, NUM_FILTER_TOTAL)
    pooled = jnp.max(h3 * mask, axis=1)                              # [nb, 9]

    # --- CLS rows (row 0 of each 32-row block) x classifier columns ---------------
    clssel = p_ref[0:SEQ, NUM_FILTER_TOTAL:PW]                       # [32, 1]
    cls3 = s[:, CLS_COL:NCOL].reshape(nb, SEQ, N_CLASS)              # [nb, 32, 2]
    cls_part = jnp.sum(cls3 * clssel, axis=1)                        # [nb, 2]

    # --- classifier: pooled term on the VPU (K=9, N=2 not worth an MXU push) ------
    wlp = p_ref[WLP_ROW:WLP_ROW + N_CLASS, 0:NUM_FILTER_TOTAL]       # [2, 9]
    pooled_part = jnp.concatenate(
        [jnp.sum(pooled * wlp[c:c + 1, :], axis=1, keepdims=True)
         for c in range(N_CLASS)], axis=1)                           # [nb, 2]

    lb = p_ref[LB_ROW:LB_ROW + 1, 0:N_CLASS]                         # [1, 2]
    out_ref[...] = pooled_part + cls_part + lb                       # one store of all logits


def _static_param_rows():
    """Static (trace-time numpy) mask rows: pool validity + CLS row selector."""
    m = np.zeros((SEQ, PW), np.float32)
    for k in range(NUM_FILTER_TOTAL):
        size = FILTER_SIZES[k // NUM_FILTERS]
        # conv position p = q - 1 exists for filter size `size` iff 1 <= q <= SEQ - size
        m[1:SEQ - size + 1, k] = 1.0
    m[0, NUM_FILTER_TOTAL] = 1.0          # the CLS embedding sits in row 0 of each block
    return m


def pack_params(conv_ws, conv_bs, w_lin, b_lin):
    """One-time parameter packing, hoisted out of the per-call path.

    Returns:
      w_big : [768, 38] f32  4 tap blocks (size-major filter order) + CLS classifier cols
      params: [36, 10]  f32  static masks + conv bias + pooled classifier weights + bias
    """
    tap_blocks = []
    for j in range(MAX_SIZE):
        cols = []
        for i, size in enumerate(FILTER_SIZES):
            if j < size:
                cols.append(jnp.transpose(conv_ws[i][:, j, :]))                 # [768, 3]
            else:
                cols.append(jnp.zeros((HIDDEN, NUM_FILTERS), jnp.float32))      # zero tap
        tap_blocks.append(jnp.concatenate(cols, axis=1))                        # [768, 9]
    w_cls = jnp.transpose(w_lin[:, NUM_FILTER_TOTAL:])                          # [768, 2]
    w_big = jnp.concatenate(tap_blocks + [w_cls], axis=1).astype(jnp.float32)   # [768, 38]

    mask_rows = jnp.asarray(_static_param_rows())                               # [32, 10]
    cb_row = jnp.zeros((1, PW), jnp.float32).at[0, :NUM_FILTER_TOTAL].set(
        jnp.concatenate(conv_bs))
    wlp_rows = jnp.zeros((N_CLASS, PW), jnp.float32).at[:, :NUM_FILTER_TOTAL].set(
        w_lin[:, :NUM_FILTER_TOTAL])
    lb_row = jnp.zeros((1, PW), jnp.float32).at[0, :N_CLASS].set(b_lin)
    params = jnp.concatenate([mask_rows, cb_row, wlp_rows, lb_row], axis=0)     # [36, 10]
    return w_big, params


@partial(jax.jit, static_argnames=("block_batch",))
def textcnn_forward(x, w_big, params, block_batch=None):
    """x: [B, 32, 768] f32; (w_big, params) from pack_params (computed once).

    Batch scaling notes (the actual run below is batch=2 -> a single tile):
      * Arithmetic intensity ~19 FLOP/byte -> memory-bound on v5e/v6e/v7x alike:
        pick block_batch >= 16 (>= 512 sublane rows per tile, ~85% of HBM roofline)
        and feed x as bf16 to halve the dominant HBM DMA (keep f32 accumulation).
      * v7x: dimension_semantics=("parallel",) shards the batch grid across the two
        TensorCores; budget double-buffered x tiles + W + scratch to <= ~24-32 MiB
        per core (64 MiB physical VMEM).
      * v6e: 128 MiB VMEM -- past block_batch ~64 (f32) set
        pltpu.CompilerParams(vmem_limit_bytes=...) and consider
        pipeline_mode=pl.Buffered(3) on the x BlockSpec.
      * v5e: keep two double-buffered tiles under the 16 MiB scoped default
        (block_batch <= ~32 f32 / ~64 bf16); block_batch % 8 == 0 keeps M a
        multiple of 256, which covers all generations' MXU shapes.
    """
    batch = x.shape[0]
    if block_batch is None:
        block_batch = batch
    assert batch % block_batch == 0, "batch must be a multiple of block_batch"
    assert block_batch == batch or block_batch % 8 == 0, (
        "partial batch tiles need block_batch % 8 == 0 for (8,128) tiling")
    rows = block_batch * SEQ
    x_flat = x.reshape(batch * SEQ, HIDDEN)            # row-major reshape, free
    return pl.pallas_call(
        textcnn_kernel,
        out_shape=jax.ShapeDtypeStruct((batch, N_CLASS), jnp.float32),
        grid_spec=pltpu.PrefetchScalarGridSpec(
            num_scalar_prefetch=0,
            grid=(batch // block_batch,),
            in_specs=[
                pl.BlockSpec((rows, HIDDEN), lambda i: (i, 0)),        # x tile
                pl.BlockSpec((HIDDEN, NCOL), lambda i: (0, 0)),        # W_big (resident)
                pl.BlockSpec((PARAM_ROWS, PW), lambda i: (0, 0)),      # packed params
            ],
            out_specs=pl.BlockSpec((block_batch, N_CLASS), lambda i: (i, 0)),
        ),
        compiler_params=pltpu.CompilerParams(dimension_semantics=("parallel",)),
    )(x_flat, w_big, params)


def reference(x, conv_ws, conv_bs, w_lin, b_lin):
    """Pure-JAX (f32, HIGHEST precision) replica of the PyTorch forward."""
    cls = x[:, 0, :]
    tok = x[:, 1:, :]
    pooled_outs = []
    for i, s in enumerate(FILTER_SIZES):
        L = TOK - s + 1
        win = jnp.stack([tok[:, j:j + L, :] for j in range(s)], axis=2)  # [B, L, s, H]
        conv = jnp.einsum('blsd,fsd->blf', win, conv_ws[i],
                          precision=HIGH) + conv_bs[i]
        h = jax.nn.relu(conv)
        pooled_outs.append(jnp.max(h, axis=1))                    # [B, 3]
    h_pool = jnp.concatenate(pooled_outs, axis=1)                 # [B, 9] size-major
    feats = jnp.concatenate([h_pool, cls], axis=1)                # [B, 777]
    return jnp.dot(feats, w_lin.T, precision=HIGH) + b_lin


if __name__ == "__main__":
    key = jax.random.PRNGKey(0)
    kx, kw, kb, kl = jax.random.split(key, 4)

    x = jax.random.normal(kx, (B, SEQ, HIDDEN), jnp.float32)

    # Synthetic parameters with the module's shapes:
    #   Conv2d(1, 3, kernel_size=(s, 768)) -> weight [3, s, 768], bias [3]
    conv_ws, conv_bs = [], []
    for i, s in enumerate(FILTER_SIZES):
        conv_ws.append(0.02 * jax.random.normal(
            jax.random.fold_in(kw, i), (NUM_FILTERS, s, HIDDEN), jnp.float32))
        conv_bs.append(0.02 * jax.random.normal(
            jax.random.fold_in(kb, i), (NUM_FILTERS,), jnp.float32))
    #   Linear(9 + 768, 2, bias=False) -> weight [2, 777]
    w_lin = 0.02 * jax.random.normal(
        kl, (N_CLASS, NUM_FILTER_TOTAL + HIDDEN), jnp.float32)
    #   self.bias = nn.Parameter(torch.ones([2]))
    b_lin = jnp.ones((N_CLASS,), jnp.float32)

    # Parameter packing happens ONCE, outside the per-call path.
    packed = jax.block_until_ready(pack_params(conv_ws, conv_bs, w_lin, b_lin))

    out = jax.block_until_ready(textcnn_forward(x, *packed))
    ref = jax.block_until_ready(reference(x, conv_ws, conv_bs, w_lin, b_lin))

    assert out.shape == (B, N_CLASS), out.shape
    # f32 MXU operands (multi-pass) vs the f32 HIGHEST reference -> tight tolerance
    # (leaves headroom for the MXU's internal pass decomposition).
    assert jnp.allclose(out, ref, atol=5e-3, rtol=5e-3), (out, ref)
    print("KERNEL_OK")
</pallas_src>

<mosaic_0001>
module attributes {stable_mosaic.version = 11 : i64} {
  func.func @textcnn_kernel(%arg0: i32, %arg1: memref<64x768xf32, #tpu.memory_space<vmem>>, %arg2: memref<768x38xf32, #tpu.memory_space<vmem>>, %arg3: memref<36x10xf32, #tpu.memory_space<vmem>>, %arg4: memref<2x2xf32, #tpu.memory_space<vmem>>) attributes {dimension_semantics = [#tpu.dimension_semantics<parallel>], iteration_bounds = array<i64: 1>, scalar_prefetch = 0 : i64, scratch_operands = 0 : i64, tpu.core_type = #tpu.core_type<tc>, window_params = [{transform_indices = @transform_0, window_bounds = array<i64: 64, 768>}, {pipeline_mode = #tpu.pipeline_mode<synchronous>, transform_indices = @transform_1, window_bounds = array<i64: 768, 38>}, {pipeline_mode = #tpu.pipeline_mode<synchronous>, transform_indices = @transform_2, window_bounds = array<i64: 36, 10>}, {transform_indices = @transform_3, window_bounds = array<i64: 2, 2>}]} {
    %c0 = arith.constant 0 : index
    %c0_0 = arith.constant 0 : index
    %0 = vector.load %arg1[%c0, %c0_0] : memref<64x768xf32, #tpu.memory_space<vmem>>, vector<64x768xf32>
    %c0_1 = arith.constant 0 : index
    %c0_2 = arith.constant 0 : index
    %1 = vector.load %arg2[%c0_1, %c0_2] : memref<768x38xf32, #tpu.memory_space<vmem>>, vector<768x38xf32>
    %cst = arith.constant dense<0.000000e+00> : vector<64x38xf32>
    %2 = tpu.matmul %0, %1, %cst {dimension_numbers = #tpu.dot_dimension_numbers<[1], [0], [0], [1], [0, 0, 1, 1], [], []>} : vector<64x768xf32>, vector<768x38xf32>, vector<64x38xf32> -> vector<64x38xf32>
    %3 = vector.extract_strided_slice %2 {offsets = [0, 0], sizes = [64, 9], strides = [1, 1]} : vector<64x38xf32> to vector<64x9xf32>
    %4 = vector.extract_strided_slice %2 {offsets = [0, 9], sizes = [64, 9], strides = [1, 1]} : vector<64x38xf32> to vector<64x9xf32>
    %c63_i32 = arith.constant 63 : i32
    %5 = tpu.dynamic_rotate %4 by %c63_i32 dim 0 : vector<64x9xf32>, i32 -> vector<64x9xf32>
    %6 = arith.addf %3, %5 : vector<64x9xf32>
    %7 = vector.extract_strided_slice %2 {offsets = [0, 18], sizes = [64, 9], strides = [1, 1]} : vector<64x38xf32> to vector<64x9xf32>
    %c62_i32 = arith.constant 62 : i32
    %8 = tpu.dynamic_rotate %7 by %c62_i32 dim 0 : vector<64x9xf32>, i32 -> vector<64x9xf32>
    %9 = arith.addf %6, %8 : vector<64x9xf32>
    %10 = vector.extract_strided_slice %2 {offsets = [0, 27], sizes = [64, 9], strides = [1, 1]} : vector<64x38xf32> to vector<64x9xf32>
    %c61_i32 = arith.constant 61 : i32
    %11 = tpu.dynamic_rotate %10 by %c61_i32 dim 0 : vector<64x9xf32>, i32 -> vector<64x9xf32>
    %12 = arith.addf %9, %11 : vector<64x9xf32>
    %c32 = arith.constant 32 : index
    %c0_3 = arith.constant 0 : index
    %13 = vector.load %arg3[%c32, %c0_3] : memref<36x10xf32, #tpu.memory_space<vmem>>, vector<1x9xf32>
    %14 = vector.broadcast %13 : vector<1x9xf32> to vector<64x9xf32>
    %15 = arith.addf %12, %14 : vector<64x9xf32>
    %cst_4 = arith.constant 0.000000e+00 : f32
    %16 = vector.broadcast %cst_4 : f32 to vector<64x9xf32>
    %17 = arith.maximumf %15, %16 : vector<64x9xf32>
    %c0_5 = arith.constant 0 : index
    %c0_6 = arith.constant 0 : index
    %18 = vector.load %arg3[%c0_5, %c0_6] : memref<36x10xf32, #tpu.memory_space<vmem>>, vector<32x9xf32>
    %19 = vector.shape_cast %17 : vector<64x9xf32> to vector<2x32x9xf32>
    %20 = vector.shape_cast %18 : vector<32x9xf32> to vector<1x32x9xf32>
    %21 = vector.broadcast %20 : vector<1x32x9xf32> to vector<2x32x9xf32>
    %22 = arith.mulf %19, %21 : vector<2x32x9xf32>
    %cst_7 = arith.constant dense<0xFF800000> : vector<2x9xf32>
    %23 = vector.multi_reduction <maximumf>, %22, %cst_7 [1] : vector<2x32x9xf32> to vector<2x9xf32>
    %c0_8 = arith.constant 0 : index
    %c9 = arith.constant 9 : index
    %24 = vector.load %arg3[%c0_8, %c9] : memref<36x10xf32, #tpu.memory_space<vmem>>, vector<32x1xf32>
    %25 = vector.extract_strided_slice %2 {offsets = [0, 36], sizes = [64, 2], strides = [1, 1]} : vector<64x38xf32> to vector<64x2xf32>
    %26 = vector.shape_cast %25 : vector<64x2xf32> to vector<2x32x2xf32>
    %27 = vector.shape_cast %24 : vector<32x1xf32> to vector<1x32x1xf32>
    %28 = vector.broadcast %27 : vector<1x32x1xf32> to vector<2x32x2xf32>
    %29 = arith.mulf %26, %28 : vector<2x32x2xf32>
    %cst_9 = arith.constant dense<0.000000e+00> : vector<2x2xf32>
    %30 = vector.multi_reduction <add>, %29, %cst_9 [1] : vector<2x32x2xf32> to vector<2x2xf32>
    %c33 = arith.constant 33 : index
    %c0_10 = arith.constant 0 : index
    %31 = vector.load %arg3[%c33, %c0_10] : memref<36x10xf32, #tpu.memory_space<vmem>>, vector<2x9xf32>
    %32 = vector.extract_strided_slice %31 {offsets = [0, 0], sizes = [1, 9], strides = [1, 1]} : vector<2x9xf32> to vector<1x9xf32>
    %33 = vector.broadcast %32 : vector<1x9xf32> to vector<2x9xf32>
    %34 = arith.mulf %23, %33 : vector<2x9xf32>
    %cst_11 = arith.constant dense<0.000000e+00> : vector<2xf32>
    %35 = vector.multi_reduction <add>, %34, %cst_11 [1] : vector<2x9xf32> to vector<2xf32>
    %36 = vector.shape_cast %35 : vector<2xf32> to vector<2x1xf32>
    %37 = vector.extract_strided_slice %31 {offsets = [1, 0], sizes = [1, 9], strides = [1, 1]} : vector<2x9xf32> to vector<1x9xf32>
    %38 = vector.broadcast %37 : vector<1x9xf32> to vector<2x9xf32>
    %39 = arith.mulf %23, %38 : vector<2x9xf32>
    %cst_12 = arith.constant dense<0.000000e+00> : vector<2xf32>
    %40 = vector.multi_reduction <add>, %39, %cst_12 [1] : vector<2x9xf32> to vector<2xf32>
    %41 = vector.shape_cast %40 : vector<2xf32> to vector<2x1xf32>
    %42 = tpu.concatenate %36, %41 in 1 : vector<2x1xf32>, vector<2x1xf32> -> vector<2x2xf32>
    %c35 = arith.constant 35 : index
    %c0_13 = arith.constant 0 : index
    %43 = vector.load %arg3[%c35, %c0_13] : memref<36x10xf32, #tpu.memory_space<vmem>>, vector<1x2xf32>
    %44 = arith.addf %42, %30 : vector<2x2xf32>
    %45 = vector.broadcast %43 : vector<1x2xf32> to vector<2x2xf32>
    %46 = arith.addf %44, %45 : vector<2x2xf32>
    %c0_14 = arith.constant 0 : index
    %c0_15 = arith.constant 0 : index
    %47 = vector.load %arg4[%c0_14, %c0_15] : memref<2x2xf32, #tpu.memory_space<vmem>>, vector<2x2xf32>
    tpu.vector_store %arg4[%c0_14, %c0_15], %46 {strides = array<i32>} : memref<2x2xf32, #tpu.memory_space<vmem>>, vector<2x2xf32>,
    return
  }
  func.func @transform_0(%arg0: i32) -> (i32, i32) {
    %c0_i32 = arith.constant 0 : i32
    %c0_i32_0 = arith.constant 0 : i32
    return %arg0, %c0_i32 : i32, i32
  }
  func.func @transform_1(%arg0: i32) -> (i32, i32) {
    %c0_i32 = arith.constant 0 : i32
    %c0_i32_0 = arith.constant 0 : i32
    %c0_i32_1 = arith.constant 0 : i32
    return %c0_i32, %c0_i32_0 : i32, i32
  }
  func.func @transform_2(%arg0: i32) -> (i32, i32) {
    %c0_i32 = arith.constant 0 : i32
    %c0_i32_0 = arith.constant 0 : i32
    %c0_i32_1 = arith.constant 0 : i32
    return %c0_i32, %c0_i32_0 : i32, i32
  }
  func.func @transform_3(%arg0: i32) -> (i32, i32) {
    %c0_i32 = arith.constant 0 : i32
    %c0_i32_0 = arith.constant 0 : i32
    return %arg0, %c0_i32 : i32, i32
  }
}

</mosaic_0001>

<llo_original>
// kernel: textcnn_forward.1
$region0: #{textcnn_forward.1}
  #allocation0 [shape = 'u32[]', space=smem, size = 0x4, offset = 0x4, fixed_abs, tag = 'smem constant byte address 0x4 - core index']
  #allocation1 [shape = 'u32[144,128]{1,0:T(1,128)}', space=vmem, size = 0x12000, scoped, tag = 'internal scratch']
  %s0 = inlined_call_operand.vmem [shape: f32[64,768], index: 0, kind: input, shape index: {}]
  %s1 = inlined_call_operand.vmem [shape: f32[768,38], index: 1, kind: input, shape index: {}]
  %s2 = inlined_call_operand.vmem [shape: f32[36,10], index: 2, kind: input, shape index: {}]
  %s3 = inlined_call_operand.hbm [shape: f32[2,2], index: 3, kind: output, shape index: {}]
  %s4 = sld [smem:[#allocation0]]
  $region22: #{textcnn_forward.1} parent=0
    _
  %s6 = ssub.s32 1, %s4
  %s7 = scalar_select 0, %s6, %s4
  $region1: #{textcnn_forward.1} parent=0
    #allocation2 [shape = 'u8[1024]{0}', space=vmem, size = 0x400, scoped, tag = 'output window, operand 0, single buffered']
    #allocation3 [shape = 's32[1]{0}', space=sflag, size = 0x4, scoped, tag = 'scoped memory for textcnn_forward.1']
    %8 = vsyncpa [#allocation3], 0
    // Predicated region
    $region2: #{textcnn_forward.1} parent=1 // pred_check
      _
    $region3: #{textcnn_forward.1} parent=1 // pred_check_branch
      %10 = sbr.rel (0) target = $region5
    $region4: #{textcnn_forward.1} parent=1 // pred_region
      _
    $region5: #{textcnn_forward.1} parent=1 // pred_fallthru
      _
    // Predicated region
    $region6: #{textcnn_forward.1} parent=1 // pred_check
      _
    $region7: #{textcnn_forward.1} parent=1 // pred_check_branch
      %12 = sbr.rel (0) target = $region9
    $region8: #{textcnn_forward.1} parent=1 // pred_region
      _
    $region9: #{textcnn_forward.1} parent=1 // pred_fallthru
      _
    // Predicated region
    $region10: #{textcnn_forward.1} parent=1 // pred_check
      _
    $region11: #{textcnn_forward.1} parent=1 // pred_check_branch
      %14 = sbr.rel (0) target = $region13
    $region12: #{textcnn_forward.1} parent=1 // pred_region
      _
    $region13: #{textcnn_forward.1} parent=1 // pred_fallthru
      _
    %v15 = vld [vmem:[%s0] sm:$0xff]
    %v16 = vld [vmem:[%s0 + $0x8] sm:$0xff]
    %v17 = vld [vmem:[%s0 + $0x10] sm:$0xff]
    %v18 = vld [vmem:[%s0 + $0x18] sm:$0xff]
    %v19 = vld [vmem:[%s0 + $0x20] sm:$0xff]
    %v20 = vld [vmem:[%s0 + $0x28] sm:$0xff]
    %v21 = vld [vmem:[%s0 + $0x30] sm:$0xff]
    %v22 = vld [vmem:[%s0 + $0x38] sm:$0xff]
    %v23 = vld [vmem:[%s0 + $0x40] sm:$0xff]
    %v24 = vld [vmem:[%s0 + $0x48] sm:$0xff]
    %v25 = vld [vmem:[%s0 + $0x50] sm:$0xff]
    %v26 = vld [vmem:[%s0 + $0x58] sm:$0xff]
    %v27 = vld [vmem:[%s0 + $0x60] sm:$0xff]
    %v28 = vld [vmem:[%s0 + $0x68] sm:$0xff]
    %v29 = vld [vmem:[%s0 + $0x70] sm:$0xff]
    %v30 = vld [vmem:[%s0 + $0x78] sm:$0xff]
    %v31 = vld [vmem:[%s0 + $0x80] sm:$0xff]
    %v32 = vld [vmem:[%s0 + $0x88] sm:$0xff]
    %v33 = vld [vmem:[%s0 + $0x90] sm:$0xff]
    %v34 = vld [vmem:[%s0 + $0x98] sm:$0xff]
    %v35 = vld [vmem:[%s0 + $0xa0] sm:$0xff]
    %v36 = vld [vmem:[%s0 + $0xa8] sm:$0xff]
    %v37 = vld [vmem:[%s0 + $0xb0] sm:$0xff]
    %v38 = vld [vmem:[%s0 + $0xb8] sm:$0xff]
    %v39 = vld [vmem:[%s0 + $0xc0] sm:$0xff]
    %v40 = vld [vmem:[%s0 + $0xc8] sm:$0xff]
    %v41 = vld [vmem:[%s0 + $0xd0] sm:$0xff]
    %v42 = vld [vmem:[%s0 + $0xd8] sm:$0xff]
    %v43 = vld [vmem:[%s0 + $0xe0] sm:$0xff]
    %v44 = vld [vmem:[%s0 + $0xe8] sm:$0xff]
    %v45 = vld [vmem:[%s0 + $0xf0] sm:$0xff]
    %v46 = vld [vmem:[%s0 + $0xf8] sm:$0xff]
    %v47 = vld [vmem:[%s0 + $0x100] sm:$0xff]
    %v48 = vld [vmem:[%s0 + $0x108] sm:$0xff]
    %v49 = vld [vmem:[%s0 + $0x110] sm:$0xff]
    %v50 = vld [vmem:[%s0 + $0x118] sm:$0xff]
    %v51 = vld [vmem:[%s0 + $0x120] sm:$0xff]
    %v52 = vld [vmem:[%s0 + $0x128] sm:$0xff]
    %v53 = vld [vmem:[%s0 + $0x130] sm:$0xff]
    %v54 = vld [vmem:[%s0 + $0x138] sm:$0xff]
    %v55 = vld [vmem:[%s0 + $0x140] sm:$0xff]
    %v56 = vld [vmem:[%s0 + $0x148] sm:$0xff]
    %v57 = vld [vmem:[%s0 + $0x150] sm:$0xff]
    %v58 = vld [vmem:[%s0 + $0x158] sm:$0xff]
    %v59 = vld [vmem:[%s0 + $0x160] sm:$0xff]
    %v60 = vld [vmem:[%s0 + $0x168] sm:$0xff]
    %v61 = vld [vmem:[%s0 + $0x170] sm:$0xff]
    %v62 = vld [vmem:[%s0 + $0x178] sm:$0xff]
    %v63 = vld [vmem:[%s1] sm:$0xff]
    %v64 = vld [vmem:[%s1 + $0x8] sm:$0xff]
    %v65 = vld [vmem:[%s1 + $0x10] sm:$0xff]
    %v66 = vld [vmem:[%s1 + $0x18] sm:$0xff]
    %v67 = vld [vmem:[%s1 + $0x20] sm:$0xff]
    %v68 = vld [vmem:[%s1 + $0x28] sm:$0xff]
    %v69 = vld [vmem:[%s1 + $0x30] sm:$0xff]
    %v70 = vld [vmem:[%s1 + $0x38] sm:$0xff]
    %v71 = vld [vmem:[%s1 + $0x40] sm:$0xff]
    %v72 = vld [vmem:[%s1 + $0x48] sm:$0xff]
    %v73 = vld [vmem:[%s1 + $0x50] sm:$0xff]
    %v74 = vld [vmem:[%s1 + $0x58] sm:$0xff]
    %v75 = vld [vmem:[%s1 + $0x60] sm:$0xff]
    %v76 = vld [vmem:[%s1 + $0x68] sm:$0xff]
    %v77 = vld [vmem:[%s1 + $0x70] sm:$0xff]
    %v78 = vld [vmem:[%s1 + $0x78] sm:$0xff]
    %v79 = vld [vmem:[%s1 + $0x80] sm:$0xff]
    %v80 = vld [vmem:[%s1 + $0x88] sm:$0xff]
    %v81 = vld [vmem:[%s1 + $0x90] sm:$0xff]
    %v82 = vld [vmem:[%s1 + $0x98] sm:$0xff]
    %v83 = vld [vmem:[%s1 + $0xa0] sm:$0xff]
    %v84 = vld [vmem:[%s1 + $0xa8] sm:$0xff]
    %v85 = vld [vmem:[%s1 + $0xb0] sm:$0xff]
    %v86 = vld [vmem:[%s1 + $0xb8] sm:$0xff]
    %v87 = vld [vmem:[%s1 + $0xc0] sm:$0xff]
    %v88 = vld [vmem:[%s1 + $0xc8] sm:$0xff]
    %v89 = vld [vmem:[%s1 + $0xd0] sm:$0xff]
    %v90 = vld [vmem:[%s1 + $0xd8] sm:$0xff]
    %v91 = vld [vmem:[%s1 + $0xe0] sm:$0xff]
    %v92 = vld [vmem:[%s1 + $0xe8] sm:$0xff]
    %v93 = vld [vmem:[%s1 + $0xf0] sm:$0xff]
    %v94 = vld [vmem:[%s1 + $0xf8] sm:$0xff]
    %v95 = vld [vmem:[%s1 + $0x100] sm:$0xff]
    %v96 = vld [vmem:[%s1 + $0x108] sm:$0xff]
    %v97 = vld [vmem:[%s1 + $0x110] sm:$0xff]
    %v98 = vld [vmem:[%s1 + $0x118] sm:$0xff]
    %v99 = vld [vmem:[%s1 + $0x120] sm:$0xff]
    %v100 = vld [vmem:[%s1 + $0x128] sm:$0xff]
    %v101 = vld [vmem:[%s1 + $0x130] sm:$0xff]
    %v102 = vld [vmem:[%s1 + $0x138] sm:$0xff]
    %v103 = vld [vmem:[%s1 + $0x140] sm:$0xff]
    %v104 = vld [vmem:[%s1 + $0x148] sm:$0xff]
    %v105 = vld [vmem:[%s1 + $0x150] sm:$0xff]
    %v106 = vld [vmem:[%s1 + $0x158] sm:$0xff]
    %v107 = vld [vmem:[%s1 + $0x160] sm:$0xff]
    %v108 = vld [vmem:[%s1 + $0x168] sm:$0xff]
    %v109 = vld [vmem:[%s1 + $0x170] sm:$0xff]
    %v110 = vld [vmem:[%s1 + $0x178] sm:$0xff]
    %v111 = vld [vmem:[%s1 + $0x180] sm:$0xff]
    %v112 = vld [vmem:[%s1 + $0x188] sm:$0xff]
    %v113 = vld [vmem:[%s1 + $0x190] sm:$0xff]
    %v114 = vld [vmem:[%s1 + $0x198] sm:$0xff]
    %v115 = vld [vmem:[%s1 + $0x1a0] sm:$0xff]
    %v116 = vld [vmem:[%s1 + $0x1a8] sm:$0xff]
    %v117 = vld [vmem:[%s1 + $0x1b0] sm:$0xff]
    %v118 = vld [vmem:[%s1 + $0x1b8] sm:$0xff]
    %v119 = vld [vmem:[%s1 + $0x1c0] sm:$0xff]
    %v120 = vld [vmem:[%s1 + $0x1c8] sm:$0xff]
    %v121 = vld [vmem:[%s1 + $0x1d0] sm:$0xff]
    %v122 = vld [vmem:[%s1 + $0x1d8] sm:$0xff]
    %v123 = vld [vmem:[%s1 + $0x1e0] sm:$0xff]
    %v124 = vld [vmem:[%s1 + $0x1e8] sm:$0xff]
    %v125 = vld [vmem:[%s1 + $0x1f0] sm:$0xff]
    %v126 = vld [vmem:[%s1 + $0x1f8] sm:$0xff]
    %v127 = vld [vmem:[%s1 + $0x200] sm:$0xff]
    %v128 = vld [vmem:[%s1 + $0x208] sm:$0xff]
    %v129 = vld [vmem:[%s1 + $0x210] sm:$0xff]
    %v130 = vld [vmem:[%s1 + $0x218] sm:$0xff]
    %v131 = vld [vmem:[%s1 + $0x220] sm:$0xff]
    %v132 = vld [vmem:[%s1 + $0x228] sm:$0xff]
    %v133 = vld [vmem:[%s1 + $0x230] sm:$0xff]
    %v134 = vld [vmem:[%s1 + $0x238] sm:$0xff]
    %v135 = vld [vmem:[%s1 + $0x240] sm:$0xff]
    %v136 = vld [vmem:[%s1 + $0x248] sm:$0xff]
    %v137 = vld [vmem:[%s1 + $0x250] sm:$0xff]
    %v138 = vld [vmem:[%s1 + $0x258] sm:$0xff]
    %v139 = vld [vmem:[%s1 + $0x260] sm:$0xff]
    %v140 = vld [vmem:[%s1 + $0x268] sm:$0xff]
    %v141 = vld [vmem:[%s1 + $0x270] sm:$0xff]
    %v142 = vld [vmem:[%s1 + $0x278] sm:$0xff]
    %v143 = vld [vmem:[%s1 + $0x280] sm:$0xff]
    %v144 = vld [vmem:[%s1 + $0x288] sm:$0xff]
    %v145 = vld [vmem:[%s1 + $0x290] sm:$0xff]
    %v146 = vld [vmem:[%s1 + $0x298] sm:$0xff]
    %v147 = vld [vmem:[%s1 + $0x2a0] sm:$0xff]
    %v148 = vld [vmem:[%s1 + $0x2a8] sm:$0xff]
    %v149 = vld [vmem:[%s1 + $0x2b0] sm:$0xff]
    %v150 = vld [vmem:[%s1 + $0x2b8] sm:$0xff]
    %v151 = vld [vmem:[%s1 + $0x2c0] sm:$0xff]
    %v152 = vld [vmem:[%s1 + $0x2c8] sm:$0xff]
    %v153 = vld [vmem:[%s1 + $0x2d0] sm:$0xff]
    %v154 = vld [vmem:[%s1 + $0x2d8] sm:$0xff]
    %v155 = vld [vmem:[%s1 + $0x2e0] sm:$0xff]
    %v156 = vld [vmem:[%s1 + $0x2e8] sm:$0xff]
    %v157 = vld [vmem:[%s1 + $0x2f0] sm:$0xff]
    %v158 = vld [vmem:[%s1 + $0x2f8] sm:$0xff]
    %159 = vmatprep.subr.mxu0 0.0
    %160 = vmatpush1.msra.mxu0 %v63
    %161 = vmatprep.subr.mxu0 0.0
    %162 = vmatpush1.msra.mxu0 %v64
    %163 = vmatprep.subr.mxu0 0.0
    %164 = vmatpush1.msra.mxu0 %v65
    %165 = vmatprep.subr.mxu0 0.0
    %166 = vmatpush1.msra.mxu0 %v66
    %167 = vmatprep.subr.mxu0 0.0
    %168 = vmatpush1.msra.mxu0 %v67
    %169 = vmatprep.subr.mxu0 0.0
    %170 = vmatpush1.msra.mxu0 %v68
    %171 = vmatprep.subr.mxu0 0.0
    %172 = vmatpush1.msra.mxu0 %v69
    %173 = vmatprep.subr.mxu0 0.0
    %174 = vmatpush1.msra.mxu0 %v70
    %175 = vmatprep.subr.mxu0 0.0
    %176 = vmatpush1.msra.mxu0 %v71
    %177 = vmatprep.subr.mxu0 0.0
    %178 = vmatpush1.msra.mxu0 %v72
    %179 = vmatprep.subr.mxu0 0.0
    %180 = vmatpush1.msra.mxu0 %v73
    %181 = vmatprep.subr.mxu0 0.0
    %182 = vmatpush1.msra.mxu0 %v74
    %183 = vmatprep.subr.mxu0 0.0
    %184 = vmatpush1.msra.mxu0 %v75
    %185 = vmatprep.subr.mxu0 0.0
    %186 = vmatpush1.msra.mxu0 %v76
    %187 = vmatprep.subr.mxu0 0.0
    %188 = vmatpush1.msra.mxu0 %v77
    %189 = vmatprep.subr.mxu0 0.0
    %190 = vmatpush1.msra.mxu0 %v78
    %191 = vmatprep.subr.mxu0 0.0
    %192 = vmatpush1.msra.mxu0 %v79
    %193 = vmatprep.subr.mxu0 0.0
    %194 = vmatpush1.msra.mxu0 %v80
    %195 = vmatprep.subr.mxu0 0.0
    %196 = vmatpush1.msra.mxu0 %v81
    %197 = vmatprep.subr.mxu0 0.0
    %198 = vmatpush1.msra.mxu0 %v82
    %199 = vmatprep.subr.mxu0 0.0
    %200 = vmatpush1.msra.mxu0 %v83
    %201 = vmatprep.subr.mxu0 0.0
    %202 = vmatpush1.msra.mxu0 %v84
    %203 = vmatprep.subr.mxu0 0.0
    %204 = vmatpush1.msra.mxu0 %v85
    %205 = vmatprep.subr.mxu0 0.0
    %206 = vmatpush1.msra.mxu0 %v86
    %207 = vmatprep.subr.mxu0 0.0
    %208 = vmatpush1.msra.mxu0 %v87
    %209 = vmatprep.subr.mxu0 0.0
    %210 = vmatpush1.msra.mxu0 %v88
    %211 = vmatprep.subr.mxu0 0.0
    %212 = vmatpush1.msra.mxu0 %v89
    %213 = vmatprep.subr.mxu0 0.0
    %214 = vmatpush1.msra.mxu0 %v90
    %215 = vmatprep.subr.mxu0 0.0
    %216 = vmatpush1.msra.mxu0 %v91
    %217 = vmatprep.subr.mxu0 0.0
    %218 = vmatpush1.msra.mxu0 %v92
    %219 = vmatprep.subr.mxu0 0.0
    %220 = vmatpush1.msra.mxu0 %v93
    %221 = vmatprep.subr.mxu0 0.0
    %222 = vmatpush1.msra.mxu0 %v94
    %223 = vmatprep.mubr.f32.mxu0 %v16
    %224 = vmatmul.mubr.f32.gmra.mrb[0].mxu0 %v15
    %v225 = vpop.f32.mrb[0].mxu0
    %v226 = vadd.f32 0.0, %v225
    %v227 = vpop.f32.mrb[0].mxu0
    %228 = vmatprep.mubr.f32.mxu0 %v22
    %229 = vmatmul.mubr.f32.gmra.mrb[0].mxu0 %v21
    %v230 = vpop.f32.mrb[0].mxu0
    %v231 = vadd.f32 0.0, %v230
    %v232 = vpop.f32.mrb[0].mxu0
    %233 = vmatprep.mubr.f32.mxu0 %v28
    %234 = vmatmul.mubr.f32.gmra.mrb[0].mxu0 %v27
    %v235 = vpop.f32.mrb[0].mxu0
    %v236 = vadd.f32 0.0, %v235
    %v237 = vpop.f32.mrb[0].mxu0
    %238 = vmatprep.mubr.f32.mxu0 %v34
    %239 = vmatmul.mubr.f32.gmra.mrb[0].mxu0 %v33
    %v240 = vpop.f32.mrb[0].mxu0
    %v241 = vadd.f32 0.0, %v240
    %v242 = vpop.f32.mrb[0].mxu0
    %243 = vmatprep.mubr.f32.mxu0 %v40
    %244 = vmatmul.mubr.f32.gmra.mrb[0].mxu0 %v39
    %v245 = vpop.f32.mrb[0].mxu0
    %v246 = vadd.f32 0.0, %v245
    %v247 = vpop.f32.mrb[0].mxu0
    %248 = vmatprep.mubr.f32.mxu0 %v46
    %249 = vmatmul.mubr.f32.gmra.mrb[0].mxu0 %v45
    %v250 = vpop.f32.mrb[0].mxu0
    %v251 = vadd.f32 0.0, %v250
    %v252 = vpop.f32.mrb[0].mxu0
    %253 = vmatprep.mubr.f32.mxu0 %v52
    %254 = vmatmul.mubr.f32.gmra.mrb[0].mxu0 %v51
    %v255 = vpop.f32.mrb[0].mxu0
    %v256 = vadd.f32 0.0, %v255
    %v257 = vpop.f32.mrb[0].mxu0
    %258 = vmatprep.mubr.f32.mxu0 %v58
    %259 = vmatmul.mubr.f32.gmra.mrb[0].mxu0 %v57
    %v260 = vpop.f32.mrb[0].mxu0
    %v261 = vadd.f32 0.0, %v260
    %v262 = vpop.f32.mrb[0].mxu0
    %263 = vdwg.mxu0
    %264 = vmatprep.subr.mxu0 0.0
    %265 = vmatpush1.msra.mxu0 %v95
    %266 = vmatprep.subr.mxu0 0.0
    %267 = vmatpush1.msra.mxu0 %v96
    %268 = vmatprep.subr.mxu0 0.0
    %269 = vmatpush1.msra.mxu0 %v97
    %270 = vmatprep.subr.mxu0 0.0
    %271 = vmatpush1.msra.mxu0 %v98
    %272 = vmatprep.subr.mxu0 0.0
    %273 = vmatpush1.msra.mxu0 %v99
    %274 = vmatprep.subr.mxu0 0.0
    %275 = vmatpush1.msra.mxu0 %v100
    %276 = vmatprep.subr.mxu0 0.0
    %277 = vmatpush1.msra.mxu0 %v101
    %278 = vmatprep.subr.mxu0 0.0
    %279 = vmatpush1.msra.mxu0 %v102
    %280 = vmatprep.subr.mxu0 0.0
    %281 = vmatpush1.msra.mxu0 %v103
    %282 = vmatprep.subr.mxu0 0.0
    %283 = vmatpush1.msra.mxu0 %v104
    %284 = vmatprep.subr.mxu0 0.0
    %285 = vmatpush1.msra.mxu0 %v105
    %286 = vmatprep.subr.mxu0 0.0
    %287 = vmatpush1.msra.mxu0 %v106
    %288 = vmatprep.subr.mxu0 0.0
    %289 = vmatpush1.msra.mxu0 %v107
    %290 = vmatprep.subr.mxu0 0.0
    %291 = vmatpush1.msra.mxu0 %v108
    %292 = vmatprep.subr.mxu0 0.0
    %293 = vmatpush1.msra.mxu0 %v109
    %294 = vmatprep.subr.mxu0 0.0
    %295 = vmatpush1.msra.mxu0 %v110
    %296 = vmatprep.subr.mxu0 0.0
    %297 = vmatpush1.msra.mxu0 %v111
    %298 = vmatprep.subr.mxu0 0.0
    %299 = vmatpush1.msra.mxu0 %v112
    %300 = vmatprep.subr.mxu0 0.0
    %301 = vmatpush1.msra.mxu0 %v113
    %302 = vmatprep.subr.mxu0 0.0
    %303 = vmatpush1.msra.mxu0 %v114
    %304 = vmatprep.subr.mxu0 0.0
    %305 = vmatpush1.msra.mxu0 %v115
    %306 = vmatprep.subr.mxu0 0.0
    %307 = vmatpush1.msra.mxu0 %v116
    %308 = vmatprep.subr.mxu0 0.0
    %309 = vmatpush1.msra.mxu0 %v117
    %310 = vmatprep.subr.mxu0 0.0
    %311 = vmatpush1.msra.mxu0 %v118
    %312 = vmatprep.subr.mxu0 0.0
    %313 = vmatpush1.msra.mxu0 %v119
    %314 = vmatprep.subr.mxu0 0.0
    %315 = vmatpush1.msra.mxu0 %v120
    %316 = vmatprep.subr.mxu0 0.0
    %317 = vmatpush1.msra.mxu0 %v121
    %318 = vmatprep.subr.mxu0 0.0
    %319 = vmatpush1.msra.mxu0 %v122
    %320 = vmatprep.subr.mxu0 0.0
    %321 = vmatpush1.msra.mxu0 %v123
    %322 = vmatprep.subr.mxu0 0.0
    %323 = vmatpush1.msra.mxu0 %v124
    %324 = vmatprep.subr.mxu0 0.0
    %325 = vmatpush1.msra.mxu0 %v125
    %326 = vmatprep.subr.mxu0 0.0
    %327 = vmatpush1.msra.mxu0 %v126
    %328 = vmatprep.mubr.f32.mxu0 %v18
    %329 = vmatmul.mubr.f32.gmra.mrb[0].mxu0 %v17
    %v330 = vpop.f32.mrb[0].mxu0
    %v331 = vadd.f32 %v226, %v330
    %v332 = vpop.f32.mrb[0].mxu0
    %333 = vmatprep.mubr.f32.mxu0 %v24
    %334 = vmatmul.mubr.f32.gmra.mrb[0].mxu0 %v23
    %v335 = vpop.f32.mrb[0].mxu0
    %v336 = vadd.f32 %v231, %v335
    %v337 = vpop.f32.mrb[0].mxu0
    %338 = vmatprep.mubr.f32.mxu0 %v30
    %339 = vmatmul.mubr.f32.gmra.mrb[0].mxu0 %v29
    %v340 = vpop.f32.mrb[0].mxu0
    %v341 = vadd.f32 %v236, %v340
    %v342 = vpop.f32.mrb[0].mxu0
    %343 = vmatprep.mubr.f32.mxu0 %v36
    %344 = vmatmul.mubr.f32.gmra.mrb[0].mxu0 %v35
    %v345 = vpop.f32.mrb[0].mxu0
    %v346 = vadd.f32 %v241, %v345
    %v347 = vpop.f32.mrb[0].mxu0
    %348 = vmatprep.mubr.f32.mxu0 %v42
    %349 = vmatmul.mubr.f32.gmra.mrb[0].mxu0 %v41
    %v350 = vpop.f32.mrb[0].mxu0
    %v351 = vadd.f32 %v246, %v350
    %v352 = vpop.f32.mrb[0].mxu0
    %353 = vmatprep.mubr.f32.mxu0 %v48
    %354 = vmatmul.mubr.f32.gmra.mrb[0].mxu0 %v47
    %v355 = vpop.f32.mrb[0].mxu0
    %v356 = vadd.f32 %v251, %v355
    %v357 = vpop.f32.mrb[0].mxu0
    %358 = vmatprep.mubr.f32.mxu0 %v54
    %359 = vmatmul.mubr.f32.gmra.mrb[0].mxu0 %v53
    %v360 = vpop.f32.mrb[0].mxu0
    %v361 = vadd.f32 %v256, %v360
    %v362 = vpop.f32.mrb[0].mxu0
    %363 = vmatprep.mubr.f32.mxu0 %v60
    %364 = vmatmul.mubr.f32.gmra.mrb[0].mxu0 %v59
    %v365 = vpop.f32.mrb[0].mxu0
    %v366 = vadd.f32 %v261, %v365
    %v367 = vpop.f32.mrb[0].mxu0
    %368 = vdwg.mxu0
    %369 = vmatprep.subr.mxu0 0.0
    %370 = vmatpush1.msra.mxu0 %v127
    %371 = vmatprep.subr.mxu0 0.0
    %372 = vmatpush1.msra.mxu0 %v128
    %373 = vmatprep.subr.mxu0 0.0
    %374 = vmatpush1.msra.mxu0 %v129
    %375 = vmatprep.subr.mxu0 0.0
    %376 = vmatpush1.msra.mxu0 %v130
    %377 = vmatprep.subr.mxu0 0.0
    %378 = vmatpush1.msra.mxu0 %v131
    %379 = vmatprep.subr.mxu0 0.0
    %380 = vmatpush1.msra.mxu0 %v132
    %381 = vmatprep.subr.mxu0 0.0
    %382 = vmatpush1.msra.mxu0 %v133
    %383 = vmatprep.subr.mxu0 0.0
    %384 = vmatpush1.msra.mxu0 %v134
    %385 = vmatprep.subr.mxu0 0.0
    %386 = vmatpush1.msra.mxu0 %v135
    %387 = vmatprep.subr.mxu0 0.0
    %388 = vmatpush1.msra.mxu0 %v136
    %389 = vmatprep.subr.mxu0 0.0
    %390 = vmatpush1.msra.mxu0 %v137
    %391 = vmatprep.subr.mxu0 0.0
    %392 = vmatpush1.msra.mxu0 %v138
    %393 = vmatprep.subr.mxu0 0.0
    %394 = vmatpush1.msra.mxu0 %v139
    %395 = vmatprep.subr.mxu0 0.0
    %396 = vmatpush1.msra.mxu0 %v140
    %397 = vmatprep.subr.mxu0 0.0
    %398 = vmatpush1.msra.mxu0 %v141
    %399 = vmatprep.subr.mxu0 0.0
    %400 = vmatpush1.msra.mxu0 %v142
    %401 = vmatprep.subr.mxu0 0.0
    %402 = vmatpush1.msra.mxu0 %v143
    %403 = vmatprep.subr.mxu0 0.0
    %404 = vmatpush1.msra.mxu0 %v144
    %405 = vmatprep.subr.mxu0 0.0
    %406 = vmatpush1.msra.mxu0 %v145
    %407 = vmatprep.subr.mxu0 0.0
    %408 = vmatpush1.msra.mxu0 %v146
    %409 = vmatprep.subr.mxu0 0.0
    %410 = vmatpush1.msra.mxu0 %v147
    %411 = vmatprep.subr.mxu0 0.0
    %412 = vmatpush1.msra.mxu0 %v148
    %413 = vmatprep.subr.mxu0 0.0
    %414 = vmatpush1.msra.mxu0 %v149
    %415 = vmatprep.subr.mxu0 0.0
    %416 = vmatpush1.msra.mxu0 %v150
    %417 = vmatprep.subr.mxu0 0.0
    %418 = vmatpush1.msra.mxu0 %v151
    %419 = vmatprep.subr.mxu0 0.0
    %420 = vmatpush1.msra.mxu0 %v152
    %421 = vmatprep.subr.mxu0 0.0
    %422 = vmatpush1.msra.mxu0 %v153
    %423 = vmatprep.subr.mxu0 0.0
    %424 = vmatpush1.msra.mxu0 %v154
    %425 = vmatprep.subr.mxu0 0.0
    %426 = vmatpush1.msra.mxu0 %v155
    %427 = vmatprep.subr.mxu0 0.0
    %428 = vmatpush1.msra.mxu0 %v156
    %429 = vmatprep.subr.mxu0 0.0
    %430 = vmatpush1.msra.mxu0 %v157
    %431 = vmatprep.subr.mxu0 0.0
    %432 = vmatpush1.msra.mxu0 %v158
    %433 = vmatprep.mubr.f32.mxu0 %v20
    %434 = vmatmul.mubr.f32.gmra.mrb[0].mxu0 %v19
    %v435 = vpop.f32.mrb[0].mxu0
    %v436 = vadd.f32 %v331, %v435
    %v437 = vpop.f32.mrb[0].mxu0
    %438 = vmatprep.mubr.f32.mxu0 %v26
    %439 = vmatmul.mubr.f32.gmra.mrb[0].mxu0 %v25
    %v440 = vpop.f32.mrb[0].mxu0
    %v441 = vadd.f32 %v336, %v440
    %v442 = vpop.f32.mrb[0].mxu0
    %443 = vmatprep.mubr.f32.mxu0 %v32
    %444 = vmatmul.mubr.f32.gmra.mrb[0].mxu0 %v31
    %v445 = vpop.f32.mrb[0].mxu0
    %v446 = vadd.f32 %v341, %v445
    %v447 = vpop.f32.mrb[0].mxu0
    %448 = vmatprep.mubr.f32.mxu0 %v38
    %449 = vmatmul.mubr.f32.gmra.mrb[0].mxu0 %v37
    %v450 = vpop.f32.mrb[0].mxu0
    %v451 = vadd.f32 %v346, %v450
    %v452 = vpop.f32.mrb[0].mxu0
    %453 = vmatprep.mubr.f32.mxu0 %v44
    %454 = vmatmul.mubr.f32.gmra.mrb[0].mxu0 %v43
    %v455 = vpop.f32.mrb[0].mxu0
    %v456 = vadd.f32 %v351, %v455
    %v457 = vpop.f32.mrb[0].mxu0
    %458 = vmatprep.mubr.f32.mxu0 %v50
    %459 = vmatmul.mubr.f32.gmra.mrb[0].mxu0 %v49
    %v460 = vpop.f32.mrb[0].mxu0
    %v461 = vadd.f32 %v356, %v460
    %v462 = vpop.f32.mrb[0].mxu0
    %463 = vmatprep.mubr.f32.mxu0 %v56
    %464 = vmatmul.mubr.f32.gmra.mrb[0].mxu0 %v55
    %v465 = vpop.f32.mrb[0].mxu0
    %v466 = vadd.f32 %v361, %v465
    %v467 = vpop.f32.mrb[0].mxu0
    %468 = vmatprep.mubr.f32.mxu0 %v62
    %469 = vmatmul.mubr.f32.gmra.mrb[0].mxu0 %v61
    %v470 = vpop.f32.mrb[0].mxu0
    %v471 = vadd.f32 %v366, %v470
    %v472 = vpop.f32.mrb[0].mxu0
    %473 = vdwg.mxu0
    %482 = vrot.lane.b32.xlu0 %v436, 119
    %v483 = vpop.permute.xlu0 %482
    %484 = vrot.lane.b32.xlu0 %v441, 119
    %v485 = vpop.permute.xlu0 %484
    %486 = vrot.lane.b32.xlu0 %v446, 119
    %v487 = vpop.permute.xlu0 %486
    %488 = vrot.lane.b32.xlu0 %v451, 119
    %v489 = vpop.permute.xlu0 %488
    %490 = vrot.lane.b32.xlu0 %v456, 119
    %v491 = vpop.permute.xlu0 %490
    %492 = vrot.lane.b32.xlu0 %v461, 119
    %v493 = vpop.permute.xlu0 %492
    %494 = vrot.lane.b32.xlu0 %v466, 119
    %v495 = vpop.permute.xlu0 %494
    %496 = vrot.lane.b32.xlu0 %v471, 119
    %v497 = vpop.permute.xlu0 %496
    %v506 = vrot.slane %v483, 1
    %v507 = vrot.slane %v485, 1
    %v508 = vrot.slane %v487, 1
    %v509 = vrot.slane %v489, 1
    %v510 = vrot.slane %v491, 1
    %v511 = vrot.slane %v493, 1
    %v512 = vrot.slane %v495, 1
    %v513 = vrot.slane %v497, 1
    %v514 = vlaneseq
    %v515 = vshrl.u32 %v514, 7
    %vm516 = vcmp.lt.s32.totalorder %v515, 7
    %v517 = vsel %vm516, %v512, %v513
    %v518 = vsel %vm516, %v511, %v512
    %v519 = vsel %vm516, %v510, %v511
    %v520 = vsel %vm516, %v509, %v510
    %v521 = vsel %vm516, %v508, %v509
    %v522 = vsel %vm516, %v507, %v508
    %v523 = vsel %vm516, %v506, %v507
    %v524 = vsel %vm516, %v513, %v506
    %v525 = vadd.f32 %v436, %v523
    %v526 = vadd.f32 %v441, %v522
    %v527 = vadd.f32 %v446, %v521
    %v528 = vadd.f32 %v451, %v520
    %v529 = vadd.f32 %v456, %v519
    %v530 = vadd.f32 %v461, %v518
    %v531 = vadd.f32 %v466, %v517
    %v532 = vadd.f32 %v471, %v524
    %533 = vrot.lane.b32.xlu0 %v436, 110
    %v534 = vpop.permute.xlu0 %533
    %535 = vrot.lane.b32.xlu0 %v441, 110
    %v536 = vpop.permute.xlu0 %535
    %537 = vrot.lane.b32.xlu0 %v446, 110
    %v538 = vpop.permute.xlu0 %537
    %539 = vrot.lane.b32.xlu0 %v451, 110
    %v540 = vpop.permute.xlu0 %539
    %541 = vrot.lane.b32.xlu0 %v456, 110
    %v542 = vpop.permute.xlu0 %541
    %543 = vrot.lane.b32.xlu0 %v461, 110
    %v544 = vpop.permute.xlu0 %543
    %545 = vrot.lane.b32.xlu0 %v466, 110
    %v546 = vpop.permute.xlu0 %545
    %547 = vrot.lane.b32.xlu0 %v471, 110
    %v548 = vpop.permute.xlu0 %547
    %v557 = vrot.slane %v534, 2
    %v558 = vrot.slane %v536, 2
    %v559 = vrot.slane %v538, 2
    %v560 = vrot.slane %v540, 2
    %v561 = vrot.slane %v542, 2
    %v562 = vrot.slane %v544, 2
    %v563 = vrot.slane %v546, 2
    %v564 = vrot.slane %v548, 2
    %vm565 = vcmp.lt.s32.totalorder %v515, 6
    %v566 = vsel %vm565, %v563, %v564
    %v567 = vsel %vm565, %v562, %v563
    %v568 = vsel %vm565, %v561, %v562
    %v569 = vsel %vm565, %v560, %v561
    %v570 = vsel %vm565, %v559, %v560
    %v571 = vsel %vm565, %v558, %v559
    %v572 = vsel %vm565, %v557, %v558
    %v573 = vsel %vm565, %v564, %v557
    %v574 = vadd.f32 %v525, %v572
    %v575 = vadd.f32 %v526, %v571
    %v576 = vadd.f32 %v527, %v570
    %v577 = vadd.f32 %v528, %v569
    %v578 = vadd.f32 %v529, %v568
    %v579 = vadd.f32 %v530, %v567
    %v580 = vadd.f32 %v531, %v566
    %v581 = vadd.f32 %v532, %v573
    %582 = vrot.lane.b32.xlu0 %v436, 101
    %v583 = vpop.permute.xlu0 %582
    %584 = vrot.lane.b32.xlu0 %v441, 101
    %v585 = vpop.permute.xlu0 %584
    %586 = vrot.lane.b32.xlu0 %v446, 101
    %v587 = vpop.permute.xlu0 %586
    %588 = vrot.lane.b32.xlu0 %v451, 101
    %v589 = vpop.permute.xlu0 %588
    %590 = vrot.lane.b32.xlu0 %v456, 101
    %v591 = vpop.permute.xlu0 %590
    %592 = vrot.lane.b32.xlu0 %v461, 101
    %v593 = vpop.permute.xlu0 %592
    %594 = vrot.lane.b32.xlu0 %v466, 101
    %v595 = vpop.permute.xlu0 %594
    %596 = vrot.lane.b32.xlu0 %v471, 101
    %v597 = vpop.permute.xlu0 %596
    %v606 = vrot.slane %v583, 3
    %v607 = vrot.slane %v585, 3
    %v608 = vrot.slane %v587, 3
    %v609 = vrot.slane %v589, 3
    %v610 = vrot.slane %v591, 3
    %v611 = vrot.slane %v593, 3
    %v612 = vrot.slane %v595, 3
    %v613 = vrot.slane %v597, 3
    %vm614 = vcmp.lt.s32.totalorder %v515, 5
    %v615 = vsel %vm614, %v612, %v613
    %v616 = vsel %vm614, %v611, %v612
    %v617 = vsel %vm614, %v610, %v611
    %v618 = vsel %vm614, %v609, %v610
    %v619 = vsel %vm614, %v608, %v609
    %v620 = vsel %vm614, %v607, %v608
    %v621 = vsel %vm614, %v606, %v607
    %v622 = vsel %vm614, %v613, %v606
    %v623 = vadd.f32 %v574, %v621
    %v624 = vadd.f32 %v575, %v620
    %v625 = vadd.f32 %v576, %v619
    %v626 = vadd.f32 %v577, %v618
    %v627 = vadd.f32 %v578, %v617
    %v628 = vadd.f32 %v579, %v616
    %v629 = vadd.f32 %v580, %v615
    %v630 = vadd.f32 %v581, %v622
    %v631 = vld [vmem:[%s2 + $0x20] sm:$0x1]
    %v632 = vlaneseq
    %v633 = vshrl.u32 %v632, 7
    %v634 = vsub.s32 0, %v633
    %v635 = vrot.slane %v631, %v634
    %v636 = vadd.f32 %v623, %v635
    %v637 = vadd.f32 %v624, %v635
    %v638 = vadd.f32 %v625, %v635
    %v639 = vadd.f32 %v626, %v635
    %v640 = vadd.f32 %v627, %v635
    %v641 = vadd.f32 %v628, %v635
    %v642 = vadd.f32 %v629, %v635
    %v643 = vadd.f32 %v630, %v635
    %v644 = vmax.f32 %v636, 0.0
    %v645 = vmax.f32 %v637, 0.0
    %v646 = vmax.f32 %v638, 0.0
    %v647 = vmax.f32 %v639, 0.0
    %v648 = vmax.f32 %v640, 0.0
    %v649 = vmax.f32 %v641, 0.0
    %v650 = vmax.f32 %v642, 0.0
    %v651 = vmax.f32 %v643, 0.0
    %v652 = vld [vmem:[%s2] sm:$0xff]
    %v653 = vld [vmem:[%s2 + $0x8] sm:$0xff]
    %v654 = vld [vmem:[%s2 + $0x10] sm:$0xff]
    %v655 = vld [vmem:[%s2 + $0x18] sm:$0xff]
    %v656 = vmul.f32 %v644, %v652
    %v657 = vmul.f32 %v645, %v653
    %v658 = vmul.f32 %v646, %v654
    %v659 = vmul.f32 %v647, %v655
    %v660 = vmul.f32 %v648, %v652
    %v661 = vmul.f32 %v649, %v653
    %v662 = vmul.f32 %v650, %v654
    %v663 = vmul.f32 %v651, %v655
    %vm664 = vcmask 72704
    %v665 = vsel %vm664, %v656, -inf
    %v666 = vsel %vm664, %v657, -inf
    %v667 = vsel %vm664, %v658, -inf
    %v668 = vmax.f32 %v665, %v667
    %v669 = vsel %vm664, %v659, -inf
    %v670 = vmax.f32 %v666, %v669
    %v671 = vmax.f32 %v668, %v670
    %v672 = vrot.slane %v671, 4
    %v673 = vmax.f32 %v671, %v672
    %v674 = vrot.slane %v673, 2
    %v675 = vmax.f32 %v673, %v674
    %v676 = vrot.slane %v675, 1
    %v677 = vmax.f32 %v675, %v676
    %v678 = vsel %vm664, %v660, -inf
    %v679 = vsel %vm664, %v661, -inf
    %v680 = vsel %vm664, %v662, -inf
    %v681 = vmax.f32 %v678, %v680
    %v682 = vsel %vm664, %v663, -inf
    %v683 = vmax.f32 %v679, %v682
    %v684 = vmax.f32 %v681, %v683
    %v685 = vrot.slane %v684, 4
    %v686 = vmax.f32 %v684, %v685
    %v687 = vrot.slane %v686, 2
    %v688 = vmax.f32 %v686, %v687
    %v689 = vrot.slane %v688, 1
    %v690 = vmax.f32 %v688, %v689
    %692 = vset.pattern.permute.xlu0 9
    %693 = vperm.xlu0 %692, %v652
    %v694 = vpop.permute.xlu0 %693
    %697 = vset.pattern.permute.xlu0 9
    %698 = vperm.xlu0 %697, %v653
    %v699 = vpop.permute.xlu0 %698
    %702 = vset.pattern.permute.xlu0 9
    %703 = vperm.xlu0 %702, %v654
    %v704 = vpop.permute.xlu0 %703
    %707 = vset.pattern.permute.xlu0 9
    %708 = vperm.xlu0 %707, %v655
    %v709 = vpop.permute.xlu0 %708
    %v711 = vmul.f32 %v436, %v694
    %v712 = vmul.f32 %v441, %v699
    %v713 = vmul.f32 %v446, %v704
    %v714 = vmul.f32 %v451, %v709
    %v715 = vmul.f32 %v456, %v694
    %v716 = vmul.f32 %v461, %v699
    %v717 = vmul.f32 %v466, %v704
    %v718 = vmul.f32 %v471, %v709
    %vm719 = vcmask 310560
    %v720 = vsel %vm719, %v711, 0.0
    %v721 = vsel %vm719, %v712, 0.0
    %v722 = vadd.f32 %v720, %v721
    %v723 = vsel %vm719, %v713, 0.0
    %v724 = vadd.f32 %v722, %v723
    %v725 = vsel %vm719, %v714, 0.0
    %v726 = vadd.f32 %v724, %v725
    %v727 = vrot.slane %v726, 4
    %v728 = vadd.f32 %v726, %v727
    %v729 = vrot.slane %v728, 2
    %v730 = vadd.f32 %v728, %v729
    %v731 = vrot.slane %v730, 1
    %v732 = vadd.f32 %v730, %v731
    %v733 = vsel %vm719, %v715, 0.0
    %v734 = vsel %vm719, %v716, 0.0
    %v735 = vadd.f32 %v733, %v734
    %v736 = vsel %vm719, %v717, 0.0
    %v737 = vadd.f32 %v735, %v736
    %v738 = vsel %vm719, %v718, 0.0
    %v739 = vadd.f32 %v737, %v738
    %v740 = vrot.slane %v739, 4
    %v741 = vadd.f32 %v739, %v740
    %v742 = vrot.slane %v741, 2
    %v743 = vadd.f32 %v741, %v742
    %v744 = vrot.slane %v743, 1
    %v745 = vadd.f32 %v743, %v744
    %v746 = vld [vmem:[%s2 + $0x21] sm:$0x3]
    %v747 = vlaneseq
    %v748 = vshrl.u32 %v747, 7
    %v749 = vsub.s32 0, %v748
    %v750 = vrot.slane %v746, %v749
    %v751 = vmul.f32 %v677, %v750
    %v752 = vmul.f32 %v690, %v750
    %v755 = vrot.slane %v752, 7
    %vm756 = vcmask 1041409
    %v757 = vsel %vm756, %v755, %v751
    %vm759 = vcmask 66560
    %v760 = vsel %vm759, %v757, 0.0
    %761 = vadd.xlane.f32.xlu0 %v760
    %v762 = vpop.xlane.xlu0 %761
    %v763 = vlaneseq
    %v764 = vshrl.u32 %v763, 7
    %v765 = vsub.s32 1, %v764
    %v766 = vrot.slane %v746, %v765
    %v767 = vmul.f32 %v677, %v766
    %v768 = vmul.f32 %v690, %v766
    %v771 = vrot.slane %v768, 7
    %v772 = vsel %vm756, %v771, %v767
    %v774 = vsel %vm759, %v772, 0.0
    %775 = vadd.xlane.f32.xlu0 %v774
    %v776 = vpop.xlane.xlu0 %775
    %vm777 = vcmask 7168
    %v778 = vsel %vm777, %v762, %v776
    %v779 = vld [vmem:[%s2 + $0x23] sm:$0x1]
    %v782 = vsel %vm756, %v745, %v732
    %783 = vrot.lane.b32.xlu0 %v782, 92
    %v784 = vpop.permute.xlu0 %783
    %v786 = vadd.f32 %v778, %v784
    %v787 = vlaneseq
    %v788 = vshrl.u32 %v787, 7
    %v789 = vsub.s32 0, %v788
    %v790 = vrot.slane %v779, %v789
    %v791 = vadd.f32 %v786, %v790
    %vm792 = vcmask 9216
    %793 = vst.msk [vmem:[#allocation2] sm:$0x3] %vm792, %v791
    // Predicated region
    $region14: #{textcnn_forward.1} parent=1 // pred_check
      _
    $region15: #{textcnn_forward.1} parent=1 // pred_check_branch
      %795 = sbr.rel (0) target = $region17
    $region16: #{textcnn_forward.1} parent=1 // pred_region
      %s797 = ssub.s32 32, 32
      %798 = vsyncadd [#allocation3], %s797
      %s800 = sshll.u32 [#allocation2], 4
      %s801 = int_to_ptr.vmem [resolvable:$true] %s800
      %803 = dma.vmem_to_hbm [thread:$0]  %s801, 32, %s3, [#allocation3]
    $region17: #{textcnn_forward.1} parent=1 // pred_fallthru
      _
    // Predicated region
    $region18: #{textcnn_forward.1} parent=1 // pred_check
      _
    $region19: #{textcnn_forward.1} parent=1 // pred_check_branch
      %805 = sbr.rel (0) target = $region21
    $region20: #{textcnn_forward.1} parent=1 // pred_region
      %806 = dma.done [#allocation3], 32
    $region21: #{textcnn_forward.1} parent=1 // pred_fallthru
      _
    %807 = vsyncpa [#allocation3], 1

</llo_original>
